<compile_context>
chip_gen: v7x
topology: tpu7x:2x2x1
jax: 0.10.0
libtpu: 0.0.40
codegen_flags: <defaults>
</compile_context>

<pallas_src>
import functools
import math

import numpy as np
import jax
import jax.numpy as jnp
from jax.experimental import pallas as pl
from jax.experimental.pallas import tpu as pltpu


# ---------------------------------------------------------------------------
# Host-side construction of the (linear) crop + resample operator
# ---------------------------------------------------------------------------
def _lanczos_antialias_matrix(in_size, out_size):
    """(in_size, in_size) matrix == reflect-pad + lanczos(a=2) conv in resample()."""
    if out_size >= in_size:
        return np.eye(in_size, dtype=np.float64)
    ratio = out_size / in_size
    nk = math.ceil(2.0 / ratio + 1)                        # ramp(): n = ceil(width/ratio + 1)
    taps = np.arange(nk, dtype=np.float64) * ratio
    xs = np.concatenate([-taps[1:][::-1], taps])[1:-1]     # ramp() output
    k = np.where((-2.0 < xs) & (xs < 2.0), np.sinc(xs) * np.sinc(xs / 2.0), 0.0)
    k = k / k.sum()                                        # lanczos() normalization
    K = k.shape[0]
    pad = (K - 1) // 2
    src = np.pad(np.arange(in_size), pad, mode="reflect")  # F.pad(..., 'reflect') index map
    C = np.zeros((in_size, in_size), dtype=np.float64)
    for i in range(in_size):
        for j in range(K):
            C[i, src[i + j]] += k[j]
    return C


def _bicubic_matrix(in_size, out_size):
    """(out_size, in_size) bicubic interpolation matrix, align_corners=True, A=-0.75."""
    A = -0.75

    def cc1(x):  # |x| <= 1
        return ((A + 2.0) * x - (A + 3.0)) * x * x + 1.0

    def cc2(x):  # 1 < |x| < 2
        return ((A * x - 5.0 * A) * x + 8.0 * A) * x - 4.0 * A

    B = np.zeros((out_size, in_size), dtype=np.float64)
    for i in range(out_size):
        coord = (i * (in_size - 1) / (out_size - 1)) if out_size > 1 else 0.0
        f = math.floor(coord)
        t = coord - f
        w = (cc2(t + 1.0), cc1(t), cc1(1.0 - t), cc2(2.0 - t))
        for j, idx in enumerate(range(f - 1, f + 3)):
            B[i, min(max(idx, 0), in_size - 1)] += w[j]
    return B


def _resample_matrix(in_size, out_size):
    return (_bicubic_matrix(in_size, out_size)
            @ _lanczos_antialias_matrix(in_size, out_size)).astype(np.float32)


# ---------------------------------------------------------------------------
# Pallas kernel: per block of CB cutouts, two canonical MXU matmuls + clamp
# ---------------------------------------------------------------------------
def _make_cutout_kernel(n_planes, width, cut_size, cut_block):
    b, W, cs, CB = n_planes, width, cut_size, cut_block

    def kernel(x_ref, ry_ref, rxt_ref, o_ref):
        # x_ref:   (H, b*W)        bf16 image, constant index_map -> resident in VMEM
        # ry_ref:  (CB, cs, H)     bf16 row crop+resample operators for this block
        # rxt_ref: (CB, W, cs)     bf16 col operators, pre-transposed host-side
        # o_ref:   (CB, b*cs, cs)  f32 output (plane-major rows; reshaped in wrapper)
        H = ry_ref.shape[2]

        # ---- Step 1: one canonical (M,K)x(K,N) dot over all planes & cutouts:
        #      M = CB*cs, K = H, N = b*W.  No broadcast, no in-kernel transpose.
        ry2 = ry_ref[...].reshape(CB * cs, H)                    # leading-dim merge
        z = jax.lax.dot_general(ry2, x_ref[...], (((1,), (0,)), ((), ())),
                                preferred_element_type=jnp.float32)   # (CB*cs, b*W)
        z = z.astype(jnp.bfloat16)                               # bf16 operands for step 2

        # ---- Step 2: one (b*cs, W) x (W, cs) dot per cutout.  The (plane-in-lanes
        #      -> plane-in-sublanes) re-layout of z is done once per cutout via a
        #      static sublane concatenate (no Ry broadcast, no batched einsum).
        for q in range(CB):
            zq = jnp.concatenate(
                [z[q * cs:(q + 1) * cs, j * W:(j + 1) * W] for j in range(b)],
                axis=0)                                          # (b*cs, W), plane-major rows
            yq = jax.lax.dot_general(zq, rxt_ref[q], (((1,), (0,)), ((), ())),
                                     preferred_element_type=jnp.float32)  # (b*cs, cs)
            o_ref[q] = jnp.clip(yq, 0.0, 1.0)                    # clamp_with_grad forward
            # TODO(synk): ClampWithGrad's straight-through backward is not
            # reproduced (forward-only clamp).

    return kernel


def _cutouts_pallas(x_t, ry_all, rxt_all, *, n_planes, cut_size, cut_block):
    H, bW = x_t.shape
    cutn = ry_all.shape[0]
    W = bW // n_planes
    n_blocks = cutn // cut_block
    kernel = _make_cutout_kernel(n_planes, W, cut_size, cut_block)

    # Explicit VMEM budget: resident image + double-buffered Ry/Rx/out blocks +
    # in-kernel temporaries (z in f32 and bf16, per-cutout zq/yq).
    img = H * bW * 2
    io_blocks = 2 * (cut_block * cut_size * H * 2
                     + cut_block * W * cut_size * 2
                     + cut_block * n_planes * cut_size * cut_size * 4)
    temps = cut_block * cut_size * bW * 6 + n_planes * cut_size * (W + cut_size) * 4
    vmem_limit = int(min(max(2 * (2 * img + io_blocks + temps), 32 * 1024 * 1024),
                         100 * 1024 * 1024))

    return pl.pallas_call(
        kernel,
        out_shape=jax.ShapeDtypeStruct(
            (cutn, n_planes * cut_size, cut_size), jnp.float32),
        grid=(n_blocks,),
        in_specs=[
            # Full image, constant block index -> DMA'd once, resident in VMEM.
            pl.BlockSpec((H, bW), lambda i: (0, 0)),
            pl.BlockSpec((cut_block, cut_size, H), lambda i: (i, 0, 0)),
            pl.BlockSpec((cut_block, W, cut_size), lambda i: (i, 0, 0)),
        ],
        out_specs=pl.BlockSpec((cut_block, n_planes * cut_size, cut_size),
                               lambda i: (i, 0, 0)),
        compiler_params=pltpu.CompilerParams(
            dimension_semantics=("parallel",),
            vmem_limit_bytes=vmem_limit),
    )(x_t, ry_all, rxt_all)


@functools.partial(jax.jit, static_argnames=("cut_size", "cut_block", "noise_fac"))
def _forward(x, ry_all, rxt_all, key, *, cut_size, cut_block, noise_fac):
    n, c, H, W = x.shape
    cutn = ry_all.shape[0]
    b = n * c
    # One-time layout plumbing in XLA, OUTSIDE the kernel: NCHW f32 -> (H, n*c*W) bf16.
    x_t = jnp.transpose(x.astype(jnp.bfloat16), (2, 0, 1, 3)).reshape(H, b * W)

    out = _cutouts_pallas(x_t, ry_all, rxt_all, n_planes=b,
                          cut_size=cut_size, cut_block=cut_block)  # (cutn, b*cs, cs)
    # Plane-major rows -> torch.cat(cutouts, dim=0) layout: pure reshape, no transpose.
    out = out.reshape(cutn * n, c, cut_size, cut_size)

    # TODO(synk): self.augs (kornia RandomAffine/Perspective/ColorJitter/Erasing)
    # has no clean Pallas equivalent; treated as identity.

    if noise_fac:
        # cutouts + facs * randn_like(cutouts);  facs ~ U(0, noise_fac) per cutout row.
        # Generated with jax.random in the wrapper (in-kernel TPU PRNG has no
        # interpret-mode lowering); XLA fuses the elementwise scale + add.
        k_fac, k_noise = jax.random.split(key)
        facs = jax.random.uniform(k_fac, (out.shape[0], 1, 1, 1),
                                  minval=0.0, maxval=noise_fac, dtype=jnp.float32)
        out = out + facs * jax.random.normal(k_noise, out.shape, dtype=jnp.float32)
    return out


# ---------------------------------------------------------------------------
# Wrapper reproducing MakeCutoutsHolywater.forward
# ---------------------------------------------------------------------------
def make_cutouts_holywater(x, cut_size, cutn, cut_pow, *, noise_fac=0.1, seed=0):
    x = jnp.asarray(x, jnp.float32)
    n, c, sideY, sideX = x.shape
    min_size_width = min(sideX, sideY)
    lower_bound = float(cut_size) / min_size_width

    # Random crop sizes / offsets drawn host-side (same distributions as the torch
    # module); crop + resample are baked into per-cutout Ry / Rx^T so the kernel
    # never dynamically slices or duplicates the image.  Operators shipped as bf16,
    # Rx already transposed to the canonical (W, cs) RHS form.
    rng = np.random.RandomState(seed)
    ry_all = np.zeros((cutn, cut_size, sideY), dtype=np.float32)
    rxt_all = np.zeros((cutn, sideX, cut_size), dtype=np.float32)
    for ii in range(cutn):
        randsize = float(np.clip(rng.normal(0.8, 0.3), lower_bound, 1.0))
        size_mult = float(np.clip(randsize ** cut_pow, lower_bound, 1.0))
        size = int(min_size_width * size_mult)
        offsetx = int(rng.randint(0, sideX - size + 1))
        offsety = int(rng.randint(0, sideY - size + 1))
        R = _resample_matrix(size, cut_size)                 # (cut_size, size)
        ry_all[ii, :, offsety:offsety + size] = R
        rxt_all[ii, offsetx:offsetx + size, :] = R.T

    # Largest block of cutouts per grid step that divides cutn (fills MXU M dim).
    cut_block = next(cb for cb in (4, 2, 1) if cutn % cb == 0)

    key = jax.random.PRNGKey(seed)
    return _forward(x,
                    jnp.asarray(ry_all, jnp.bfloat16),
                    jnp.asarray(rxt_all, jnp.bfloat16),
                    key,
                    cut_size=int(cut_size),
                    cut_block=int(cut_block),
                    noise_fac=float(noise_fac) if noise_fac else 0.0)


if __name__ == "__main__":
    key = jax.random.PRNGKey(0)
    x = jax.random.uniform(key, (2, 4, 16, 16), dtype=jnp.float32)   # NCHW input image
    cut_size, cutn, cut_pow = 8, 4, 1.0
    out = make_cutouts_holywater(x, cut_size, cutn, cut_pow, seed=0)
    out = jax.block_until_ready(out)
    assert out.shape == (cutn * x.shape[0], x.shape[1], cut_size, cut_size)
    assert out.dtype == jnp.float32
    print("KERNEL_OK")
</pallas_src>

<mosaic_0001>
module attributes {stable_mosaic.version = 11 : i64} {
  func.func @kernel(%arg0: i32, %arg1: memref<16x128xbf16, #tpu.memory_space<vmem>>, %arg2: memref<4x8x16xbf16, #tpu.memory_space<vmem>>, %arg3: memref<4x16x8xbf16, #tpu.memory_space<vmem>>, %arg4: memref<4x64x8xf32, #tpu.memory_space<vmem>>) attributes {dimension_semantics = [#tpu.dimension_semantics<parallel>], iteration_bounds = array<i64: 1>, scalar_prefetch = 0 : i64, scratch_operands = 0 : i64, tpu.core_type = #tpu.core_type<tc>, window_params = [{pipeline_mode = #tpu.pipeline_mode<synchronous>, transform_indices = @transform_0, window_bounds = array<i64: 16, 128>}, {transform_indices = @transform_1, window_bounds = array<i64: 4, 8, 16>}, {transform_indices = @transform_2, window_bounds = array<i64: 4, 16, 8>}, {transform_indices = @transform_3, window_bounds = array<i64: 4, 64, 8>}]} {
    %c0 = arith.constant 0 : index
    %c0_0 = arith.constant 0 : index
    %c0_1 = arith.constant 0 : index
    %0 = vector.load %arg2[%c0, %c0_0, %c0_1] : memref<4x8x16xbf16, #tpu.memory_space<vmem>>, vector<4x8x16xbf16>
    %1 = vector.shape_cast %0 : vector<4x8x16xbf16> to vector<32x16xbf16>
    %c0_2 = arith.constant 0 : index
    %c0_3 = arith.constant 0 : index
    %2 = vector.load %arg1[%c0_2, %c0_3] : memref<16x128xbf16, #tpu.memory_space<vmem>>, vector<16x128xbf16>
    %cst = arith.constant dense<0.000000e+00> : vector<32x128xf32>
    %3 = tpu.matmul %1, %2, %cst {dimension_numbers = #tpu.dot_dimension_numbers<[1], [0], [0], [1], [0, 0, 1, 1], [], []>} : vector<32x16xbf16>, vector<16x128xbf16>, vector<32x128xf32> -> vector<32x128xf32>
    %4 = arith.truncf %3 : vector<32x128xf32> to vector<32x128xbf16>
    %5 = vector.extract_strided_slice %4 {offsets = [0, 0], sizes = [8, 16], strides = [1, 1]} : vector<32x128xbf16> to vector<8x16xbf16>
    %6 = vector.extract_strided_slice %4 {offsets = [0, 16], sizes = [8, 16], strides = [1, 1]} : vector<32x128xbf16> to vector<8x16xbf16>
    %7 = vector.extract_strided_slice %4 {offsets = [0, 32], sizes = [8, 16], strides = [1, 1]} : vector<32x128xbf16> to vector<8x16xbf16>
    %8 = vector.extract_strided_slice %4 {offsets = [0, 48], sizes = [8, 16], strides = [1, 1]} : vector<32x128xbf16> to vector<8x16xbf16>
    %9 = vector.extract_strided_slice %4 {offsets = [0, 64], sizes = [8, 16], strides = [1, 1]} : vector<32x128xbf16> to vector<8x16xbf16>
    %10 = vector.extract_strided_slice %4 {offsets = [0, 80], sizes = [8, 16], strides = [1, 1]} : vector<32x128xbf16> to vector<8x16xbf16>
    %11 = vector.extract_strided_slice %4 {offsets = [0, 96], sizes = [8, 16], strides = [1, 1]} : vector<32x128xbf16> to vector<8x16xbf16>
    %12 = vector.extract_strided_slice %4 {offsets = [0, 112], sizes = [8, 16], strides = [1, 1]} : vector<32x128xbf16> to vector<8x16xbf16>
    %13 = tpu.concatenate %5, %6, %7, %8, %9, %10, %11, %12 in 0 : vector<8x16xbf16>, vector<8x16xbf16>, vector<8x16xbf16>, vector<8x16xbf16>, vector<8x16xbf16>, vector<8x16xbf16>, vector<8x16xbf16>, vector<8x16xbf16> -> vector<64x16xbf16>
    %c0_4 = arith.constant 0 : index
    %c0_5 = arith.constant 0 : index
    %c0_6 = arith.constant 0 : index
    %14 = vector.load %arg3[%c0_4, %c0_5, %c0_6] : memref<4x16x8xbf16, #tpu.memory_space<vmem>>, vector<1x16x8xbf16>
    %15 = vector.shape_cast %14 : vector<1x16x8xbf16> to vector<16x8xbf16>
    %cst_7 = arith.constant dense<0.000000e+00> : vector<64x8xf32>
    %16 = tpu.matmul %13, %15, %cst_7 {dimension_numbers = #tpu.dot_dimension_numbers<[1], [0], [0], [1], [0, 0, 1, 1], [], []>} : vector<64x16xbf16>, vector<16x8xbf16>, vector<64x8xf32> -> vector<64x8xf32>
    %cst_8 = arith.constant 0.000000e+00 : f32
    %cst_9 = arith.constant 1.000000e+00 : f32
    %17 = vector.broadcast %cst_8 : f32 to vector<64x8xf32>
    %18 = arith.maximumf %17, %16 : vector<64x8xf32>
    %19 = vector.broadcast %cst_9 : f32 to vector<64x8xf32>
    %20 = arith.minimumf %19, %18 : vector<64x8xf32>
    %c0_10 = arith.constant 0 : index
    %c0_11 = arith.constant 0 : index
    %c0_12 = arith.constant 0 : index
    %21 = vector.load %arg4[%c0_10, %c0_11, %c0_12] : memref<4x64x8xf32, #tpu.memory_space<vmem>>, vector<1x64x8xf32>
    %22 = vector.shape_cast %21 : vector<1x64x8xf32> to vector<64x8xf32>
    %23 = vector.shape_cast %20 : vector<64x8xf32> to vector<1x64x8xf32>
    tpu.vector_store %arg4[%c0_10, %c0_11, %c0_12], %23 {strides = array<i32>} : memref<4x64x8xf32, #tpu.memory_space<vmem>>, vector<1x64x8xf32>,
    %24 = vector.extract_strided_slice %4 {offsets = [8, 0], sizes = [8, 16], strides = [1, 1]} : vector<32x128xbf16> to vector<8x16xbf16>
    %25 = vector.extract_strided_slice %4 {offsets = [8, 16], sizes = [8, 16], strides = [1, 1]} : vector<32x128xbf16> to vector<8x16xbf16>
    %26 = vector.extract_strided_slice %4 {offsets = [8, 32], sizes = [8, 16], strides = [1, 1]} : vector<32x128xbf16> to vector<8x16xbf16>
    %27 = vector.extract_strided_slice %4 {offsets = [8, 48], sizes = [8, 16], strides = [1, 1]} : vector<32x128xbf16> to vector<8x16xbf16>
    %28 = vector.extract_strided_slice %4 {offsets = [8, 64], sizes = [8, 16], strides = [1, 1]} : vector<32x128xbf16> to vector<8x16xbf16>
    %29 = vector.extract_strided_slice %4 {offsets = [8, 80], sizes = [8, 16], strides = [1, 1]} : vector<32x128xbf16> to vector<8x16xbf16>
    %30 = vector.extract_strided_slice %4 {offsets = [8, 96], sizes = [8, 16], strides = [1, 1]} : vector<32x128xbf16> to vector<8x16xbf16>
    %31 = vector.extract_strided_slice %4 {offsets = [8, 112], sizes = [8, 16], strides = [1, 1]} : vector<32x128xbf16> to vector<8x16xbf16>
    %32 = tpu.concatenate %24, %25, %26, %27, %28, %29, %30, %31 in 0 : vector<8x16xbf16>, vector<8x16xbf16>, vector<8x16xbf16>, vector<8x16xbf16>, vector<8x16xbf16>, vector<8x16xbf16>, vector<8x16xbf16>, vector<8x16xbf16> -> vector<64x16xbf16>
    %c1 = arith.constant 1 : index
    %c0_13 = arith.constant 0 : index
    %c0_14 = arith.constant 0 : index
    %33 = vector.load %arg3[%c1, %c0_13, %c0_14] : memref<4x16x8xbf16, #tpu.memory_space<vmem>>, vector<1x16x8xbf16>
    %34 = vector.shape_cast %33 : vector<1x16x8xbf16> to vector<16x8xbf16>
    %cst_15 = arith.constant dense<0.000000e+00> : vector<64x8xf32>
    %35 = tpu.matmul %32, %34, %cst_15 {dimension_numbers = #tpu.dot_dimension_numbers<[1], [0], [0], [1], [0, 0, 1, 1], [], []>} : vector<64x16xbf16>, vector<16x8xbf16>, vector<64x8xf32> -> vector<64x8xf32>
    %cst_16 = arith.constant 0.000000e+00 : f32
    %cst_17 = arith.constant 1.000000e+00 : f32
    %36 = vector.broadcast %cst_16 : f32 to vector<64x8xf32>
    %37 = arith.maximumf %36, %35 : vector<64x8xf32>
    %38 = vector.broadcast %cst_17 : f32 to vector<64x8xf32>
    %39 = arith.minimumf %38, %37 : vector<64x8xf32>
    %c1_18 = arith.constant 1 : index
    %c0_19 = arith.constant 0 : index
    %c0_20 = arith.constant 0 : index
    %40 = vector.load %arg4[%c1_18, %c0_19, %c0_20] : memref<4x64x8xf32, #tpu.memory_space<vmem>>, vector<1x64x8xf32>
    %41 = vector.shape_cast %40 : vector<1x64x8xf32> to vector<64x8xf32>
    %42 = vector.shape_cast %39 : vector<64x8xf32> to vector<1x64x8xf32>
    tpu.vector_store %arg4[%c1_18, %c0_19, %c0_20], %42 {strides = array<i32>} : memref<4x64x8xf32, #tpu.memory_space<vmem>>, vector<1x64x8xf32>,
    %43 = vector.extract_strided_slice %4 {offsets = [16, 0], sizes = [8, 16], strides = [1, 1]} : vector<32x128xbf16> to vector<8x16xbf16>
    %44 = vector.extract_strided_slice %4 {offsets = [16, 16], sizes = [8, 16], strides = [1, 1]} : vector<32x128xbf16> to vector<8x16xbf16>
    %45 = vector.extract_strided_slice %4 {offsets = [16, 32], sizes = [8, 16], strides = [1, 1]} : vector<32x128xbf16> to vector<8x16xbf16>
    %46 = vector.extract_strided_slice %4 {offsets = [16, 48], sizes = [8, 16], strides = [1, 1]} : vector<32x128xbf16> to vector<8x16xbf16>
    %47 = vector.extract_strided_slice %4 {offsets = [16, 64], sizes = [8, 16], strides = [1, 1]} : vector<32x128xbf16> to vector<8x16xbf16>
    %48 = vector.extract_strided_slice %4 {offsets = [16, 80], sizes = [8, 16], strides = [1, 1]} : vector<32x128xbf16> to vector<8x16xbf16>
    %49 = vector.extract_strided_slice %4 {offsets = [16, 96], sizes = [8, 16], strides = [1, 1]} : vector<32x128xbf16> to vector<8x16xbf16>
    %50 = vector.extract_strided_slice %4 {offsets = [16, 112], sizes = [8, 16], strides = [1, 1]} : vector<32x128xbf16> to vector<8x16xbf16>
    %51 = tpu.concatenate %43, %44, %45, %46, %47, %48, %49, %50 in 0 : vector<8x16xbf16>, vector<8x16xbf16>, vector<8x16xbf16>, vector<8x16xbf16>, vector<8x16xbf16>, vector<8x16xbf16>, vector<8x16xbf16>, vector<8x16xbf16> -> vector<64x16xbf16>
    %c2 = arith.constant 2 : index
    %c0_21 = arith.constant 0 : index
    %c0_22 = arith.constant 0 : index
    %52 = vector.load %arg3[%c2, %c0_21, %c0_22] : memref<4x16x8xbf16, #tpu.memory_space<vmem>>, vector<1x16x8xbf16>
    %53 = vector.shape_cast %52 : vector<1x16x8xbf16> to vector<16x8xbf16>
    %cst_23 = arith.constant dense<0.000000e+00> : vector<64x8xf32>
    %54 = tpu.matmul %51, %53, %cst_23 {dimension_numbers = #tpu.dot_dimension_numbers<[1], [0], [0], [1], [0, 0, 1, 1], [], []>} : vector<64x16xbf16>, vector<16x8xbf16>, vector<64x8xf32> -> vector<64x8xf32>
    %cst_24 = arith.constant 0.000000e+00 : f32
    %cst_25 = arith.constant 1.000000e+00 : f32
    %55 = vector.broadcast %cst_24 : f32 to vector<64x8xf32>
    %56 = arith.maximumf %55, %54 : vector<64x8xf32>
    %57 = vector.broadcast %cst_25 : f32 to vector<64x8xf32>
    %58 = arith.minimumf %57, %56 : vector<64x8xf32>
    %c2_26 = arith.constant 2 : index
    %c0_27 = arith.constant 0 : index
    %c0_28 = arith.constant 0 : index
    %59 = vector.load %arg4[%c2_26, %c0_27, %c0_28] : memref<4x64x8xf32, #tpu.memory_space<vmem>>, vector<1x64x8xf32>
    %60 = vector.shape_cast %59 : vector<1x64x8xf32> to vector<64x8xf32>
    %61 = vector.shape_cast %58 : vector<64x8xf32> to vector<1x64x8xf32>
    tpu.vector_store %arg4[%c2_26, %c0_27, %c0_28], %61 {strides = array<i32>} : memref<4x64x8xf32, #tpu.memory_space<vmem>>, vector<1x64x8xf32>,
    %62 = vector.extract_strided_slice %4 {offsets = [24, 0], sizes = [8, 16], strides = [1, 1]} : vector<32x128xbf16> to vector<8x16xbf16>
    %63 = vector.extract_strided_slice %4 {offsets = [24, 16], sizes = [8, 16], strides = [1, 1]} : vector<32x128xbf16> to vector<8x16xbf16>
    %64 = vector.extract_strided_slice %4 {offsets = [24, 32], sizes = [8, 16], strides = [1, 1]} : vector<32x128xbf16> to vector<8x16xbf16>
    %65 = vector.extract_strided_slice %4 {offsets = [24, 48], sizes = [8, 16], strides = [1, 1]} : vector<32x128xbf16> to vector<8x16xbf16>
    %66 = vector.extract_strided_slice %4 {offsets = [24, 64], sizes = [8, 16], strides = [1, 1]} : vector<32x128xbf16> to vector<8x16xbf16>
    %67 = vector.extract_strided_slice %4 {offsets = [24, 80], sizes = [8, 16], strides = [1, 1]} : vector<32x128xbf16> to vector<8x16xbf16>
    %68 = vector.extract_strided_slice %4 {offsets = [24, 96], sizes = [8, 16], strides = [1, 1]} : vector<32x128xbf16> to vector<8x16xbf16>
    %69 = vector.extract_strided_slice %4 {offsets = [24, 112], sizes = [8, 16], strides = [1, 1]} : vector<32x128xbf16> to vector<8x16xbf16>
    %70 = tpu.concatenate %62, %63, %64, %65, %66, %67, %68, %69 in 0 : vector<8x16xbf16>, vector<8x16xbf16>, vector<8x16xbf16>, vector<8x16xbf16>, vector<8x16xbf16>, vector<8x16xbf16>, vector<8x16xbf16>, vector<8x16xbf16> -> vector<64x16xbf16>
    %c3 = arith.constant 3 : index
    %c0_29 = arith.constant 0 : index
    %c0_30 = arith.constant 0 : index
    %71 = vector.load %arg3[%c3, %c0_29, %c0_30] : memref<4x16x8xbf16, #tpu.memory_space<vmem>>, vector<1x16x8xbf16>
    %72 = vector.shape_cast %71 : vector<1x16x8xbf16> to vector<16x8xbf16>
    %cst_31 = arith.constant dense<0.000000e+00> : vector<64x8xf32>
    %73 = tpu.matmul %70, %72, %cst_31 {dimension_numbers = #tpu.dot_dimension_numbers<[1], [0], [0], [1], [0, 0, 1, 1], [], []>} : vector<64x16xbf16>, vector<16x8xbf16>, vector<64x8xf32> -> vector<64x8xf32>
    %cst_32 = arith.constant 0.000000e+00 : f32
    %cst_33 = arith.constant 1.000000e+00 : f32
    %74 = vector.broadcast %cst_32 : f32 to vector<64x8xf32>
    %75 = arith.maximumf %74, %73 : vector<64x8xf32>
    %76 = vector.broadcast %cst_33 : f32 to vector<64x8xf32>
    %77 = arith.minimumf %76, %75 : vector<64x8xf32>
    %c3_34 = arith.constant 3 : index
    %c0_35 = arith.constant 0 : index
    %c0_36 = arith.constant 0 : index
    %78 = vector.load %arg4[%c3_34, %c0_35, %c0_36] : memref<4x64x8xf32, #tpu.memory_space<vmem>>, vector<1x64x8xf32>
    %79 = vector.shape_cast %78 : vector<1x64x8xf32> to vector<64x8xf32>
    %80 = vector.shape_cast %77 : vector<64x8xf32> to vector<1x64x8xf32>
    tpu.vector_store %arg4[%c3_34, %c0_35, %c0_36], %80 {strides = array<i32>} : memref<4x64x8xf32, #tpu.memory_space<vmem>>, vector<1x64x8xf32>,
    return
  }
  func.func @transform_0(%arg0: i32) -> (i32, i32) {
    %c0_i32 = arith.constant 0 : i32
    %c0_i32_0 = arith.constant 0 : i32
    %c0_i32_1 = arith.constant 0 : i32
    return %c0_i32, %c0_i32_0 : i32, i32
  }
  func.func @transform_1(%arg0: i32) -> (i32, i32, i32) {
    %c0_i32 = arith.constant 0 : i32
    %c0_i32_0 = arith.constant 0 : i32
    %c0_i32_1 = arith.constant 0 : i32
    return %arg0, %c0_i32, %c0_i32_0 : i32, i32, i32
  }
  func.func @transform_2(%arg0: i32) -> (i32, i32, i32) {
    %c0_i32 = arith.constant 0 : i32
    %c0_i32_0 = arith.constant 0 : i32
    %c0_i32_1 = arith.constant 0 : i32
    return %arg0, %c0_i32, %c0_i32_0 : i32, i32, i32
  }
  func.func @transform_3(%arg0: i32) -> (i32, i32, i32) {
    %c0_i32 = arith.constant 0 : i32
    %c0_i32_0 = arith.constant 0 : i32
    %c0_i32_1 = arith.constant 0 : i32
    return %arg0, %c0_i32, %c0_i32_0 : i32, i32, i32
  }
}

</mosaic_0001>

<llo_original>
// kernel: _forward.3
$region0: #{_forward.3}
  #allocation0 [shape = 'u32[]', space=smem, size = 0x4, offset = 0x4, fixed_abs, tag = 'smem constant byte address 0x4 - core index']
  #allocation1 [shape = 'u32[144,128]{1,0:T(1,128)}', space=vmem, size = 0x12000, scoped, tag = 'internal scratch']
  %s0 = inlined_call_operand.vmem [shape: bf16[16,128], index: 0, kind: input, shape index: {}]
  %s1 = inlined_call_operand.vmem [shape: bf16[4,8,16], index: 1, kind: input, shape index: {}]
  %s2 = inlined_call_operand.vmem [shape: bf16[4,16,8], index: 2, kind: input, shape index: {}]
  %s3 = inlined_call_operand.vmem [shape: f32[4,64,8], index: 3, kind: output, shape index: {}]
  %s4 = sld [smem:[#allocation0]]
  $region22: #{_forward.3} parent=0
    _
  %s6 = ssub.s32 1, %s4
  %s7 = scalar_select 0, %s6, %s4
  // Predicated region
  $region2: #{_forward.3} parent=0 // pred_check
    _
  $region3: #{_forward.3} parent=0 // pred_check_branch
    %9 = sbr.rel (0) target = $region5
  $region4: #{_forward.3} parent=0 // pred_region
    _
  $region5: #{_forward.3} parent=0 // pred_fallthru
    _
  // Predicated region
  $region6: #{_forward.3} parent=0 // pred_check
    _
  $region7: #{_forward.3} parent=0 // pred_check_branch
    %11 = sbr.rel (0) target = $region9
  $region8: #{_forward.3} parent=0 // pred_region
    _
  $region9: #{_forward.3} parent=0 // pred_fallthru
    _
  // Predicated region
  $region10: #{_forward.3} parent=0 // pred_check
    _
  $region11: #{_forward.3} parent=0 // pred_check_branch
    %13 = sbr.rel (0) target = $region13
  $region12: #{_forward.3} parent=0 // pred_region
    _
  $region13: #{_forward.3} parent=0 // pred_fallthru
    _
  %v15 = vld [vmem:[%s1] sm:$0xf]
  %v16 = vld [vmem:[%s1 + $0x4] sm:$0xf]
  %v17 = vld [vmem:[%s1 + $0x8] sm:$0xf]
  %v18 = vld [vmem:[%s1 + $0xc] sm:$0xf]
  %v19 = vld [vmem:[%s0] sm:$0xf]
  %v20 = vld [vmem:[%s0 + $0x4] sm:$0xf]
  %v25 = vunpack.c.l.b16 %v15
  %v26 = vunpack.c.l.b16 %v16
  %v27 = vunpack.c.l.b16 %v17
  %v28 = vunpack.c.l.b16 %v18
  %v29 = vpack.c.b16 %v26, %v25
  %v30 = vpack.c.b16 %v28, %v27
  %v33 = vunpack.c.l.b16 %v19
  %v34 = vunpack.c.l.b16 %v20
  %v35 = vpack.c.b16 %v34, %v33
  %vm37 = vcmask 130048
  %v39 = vsel %vm37, %v29, 0
  %v42 = vsel %vm37, %v30, 0
  %44 = vmatprep.subr.bf16.mxu0 0
  %45 = vmatpush1.bf16.msra.mxu0 %v35
  %46 = vmatprep.subr.bf16.mxu0 0
  %47 = vmatpush1.bf16.msra.mxu0 0
  %48 = vmatprep.subr.bf16.mxu0 0
  %49 = vmatpush1.bf16.msra.mxu0 0
  %50 = vmatprep.subr.bf16.mxu0 0
  %51 = vmatpush1.bf16.msra.mxu0 0
  %52 = vmatprep.subr.bf16.mxu0 0
  %53 = vmatpush1.bf16.msra.mxu0 0
  %54 = vmatprep.subr.bf16.mxu0 0
  %55 = vmatpush1.bf16.msra.mxu0 0
  %56 = vmatprep.subr.bf16.mxu0 0
  %57 = vmatpush1.bf16.msra.mxu0 0
  %58 = vmatprep.subr.bf16.mxu0 0
  %59 = vmatpush1.bf16.msra.mxu0 0
  %60 = vmatprep.subr.bf16.mxu0 0
  %61 = vmatpush1.bf16.msra.mxu0 0
  %62 = vmatprep.subr.bf16.mxu0 0
  %63 = vmatpush1.bf16.msra.mxu0 0
  %64 = vmatprep.subr.bf16.mxu0 0
  %65 = vmatpush1.bf16.msra.mxu0 0
  %66 = vmatprep.subr.bf16.mxu0 0
  %67 = vmatpush1.bf16.msra.mxu0 0
  %68 = vmatprep.subr.bf16.mxu0 0
  %69 = vmatpush1.bf16.msra.mxu0 0
  %70 = vmatprep.subr.bf16.mxu0 0
  %71 = vmatpush1.bf16.msra.mxu0 0
  %72 = vmatprep.subr.bf16.mxu0 0
  %73 = vmatpush1.bf16.msra.mxu0 0
  %74 = vmatprep.subr.bf16.mxu0 0
  %75 = vmatpush1.bf16.msra.mxu0 0
  %76 = vmatprep.mubr.bf16.mxu0 0
  %77 = vmatmul.mubr.bf16.gmra.mrb[0].mxu0 %v39
  %v78 = vpop.f32.mrb[0].mxu0
  %v79 = vadd.f32 0.0, %v78
  %v80 = vpop.f32.mrb[0].mxu0
  %v81 = vpop.f32.mrb[0].mxu0
  %v82 = vadd.f32 0.0, %v81
  %v83 = vpop.f32.mrb[0].mxu0
  %84 = vmatprep.mubr.bf16.mxu0 0
  %85 = vmatmul.mubr.bf16.gmra.mrb[0].mxu0 %v42
  %v86 = vpop.f32.mrb[0].mxu0
  %v87 = vadd.f32 0.0, %v86
  %v88 = vpop.f32.mrb[0].mxu0
  %v89 = vpop.f32.mrb[0].mxu0
  %v90 = vadd.f32 0.0, %v89
  %v91 = vpop.f32.mrb[0].mxu0
  %92 = vdwg.mxu0
  %v93 = vpack.c.bf16 %v82, %v79
  %v94 = vpack.c.bf16 %v90, %v87
  %v96 = vrot.slane %v93, 4
  %97 = vrot.lane.b32.xlu0 %v96, 112
  %v98 = vpop.permute.xlu0 %97
  %99 = vrot.lane.b32.xlu0 %v93, 96
  %v100 = vpop.permute.xlu0 %99
  %101 = vrot.lane.b32.xlu0 %v96, 80
  %v102 = vpop.permute.xlu0 %101
  %103 = vrot.lane.b32.xlu0 %v93, 64
  %v104 = vpop.permute.xlu0 %103
  %105 = vrot.lane.b32.xlu0 %v96, 48
  %v106 = vpop.permute.xlu0 %105
  %107 = vrot.lane.b32.xlu0 %v93, 32
  %v108 = vpop.permute.xlu0 %107
  %109 = vrot.lane.b32.xlu0 %v96, 16
  %v110 = vpop.permute.xlu0 %109
  %vm111 = vcmask 1043456
  %v114 = vsel %vm111, %v93, %v98
  %v117 = vsel %vm111, %v100, %v102
  %v120 = vsel %vm111, %v104, %v106
  %v123 = vsel %vm111, %v108, %v110
  %v124 = vld [vmem:[%s2] sm:$0xf]
  %v125 = vld [vmem:[%s2 + $0x4] sm:$0xf]
  %v128 = vunpack.c.l.b16 %v124
  %v129 = vunpack.c.l.b16 %v125
  %v130 = vpack.c.b16 %v129, %v128
  %v132 = vsel %vm37, %v114, 0
  %v134 = vsel %vm37, %v117, 0
  %v136 = vsel %vm37, %v120, 0
  %v138 = vsel %vm37, %v123, 0
  %140 = vmatprep.subr.bf16.mxu0 0
  %141 = vmatpush1.bf16.msra.mxu0 %v130
  %142 = vmatprep.subr.bf16.mxu0 0
  %143 = vmatpush1.bf16.msra.mxu0 0
  %144 = vmatprep.subr.bf16.mxu0 0
  %145 = vmatpush1.bf16.msra.mxu0 0
  %146 = vmatprep.subr.bf16.mxu0 0
  %147 = vmatpush1.bf16.msra.mxu0 0
  %148 = vmatprep.subr.bf16.mxu0 0
  %149 = vmatpush1.bf16.msra.mxu0 0
  %150 = vmatprep.subr.bf16.mxu0 0
  %151 = vmatpush1.bf16.msra.mxu0 0
  %152 = vmatprep.subr.bf16.mxu0 0
  %153 = vmatpush1.bf16.msra.mxu0 0
  %154 = vmatprep.subr.bf16.mxu0 0
  %155 = vmatpush1.bf16.msra.mxu0 0
  %156 = vmatprep.subr.bf16.mxu0 0
  %157 = vmatpush1.bf16.msra.mxu0 0
  %158 = vmatprep.subr.bf16.mxu0 0
  %159 = vmatpush1.bf16.msra.mxu0 0
  %160 = vmatprep.subr.bf16.mxu0 0
  %161 = vmatpush1.bf16.msra.mxu0 0
  %162 = vmatprep.subr.bf16.mxu0 0
  %163 = vmatpush1.bf16.msra.mxu0 0
  %164 = vmatprep.subr.bf16.mxu0 0
  %165 = vmatpush1.bf16.msra.mxu0 0
  %166 = vmatprep.subr.bf16.mxu0 0
  %167 = vmatpush1.bf16.msra.mxu0 0
  %168 = vmatprep.subr.bf16.mxu0 0
  %169 = vmatpush1.bf16.msra.mxu0 0
  %170 = vmatprep.subr.bf16.mxu0 0
  %171 = vmatpush1.bf16.msra.mxu0 0
  %172 = vmatprep.mubr.bf16.mxu0 0
  %173 = vmatmul.mubr.bf16.gmra.mrb[0].mxu0 %v132
  %v174 = vpop.f32.mrb[0].mxu0
  %v175 = vadd.f32 0.0, %v174
  %v176 = vpop.f32.mrb[0].mxu0
  %v177 = vpop.f32.mrb[0].mxu0
  %v178 = vadd.f32 0.0, %v177
  %v179 = vpop.f32.mrb[0].mxu0
  %180 = vmatprep.mubr.bf16.mxu0 0
  %181 = vmatmul.mubr.bf16.gmra.mrb[0].mxu0 %v134
  %v182 = vpop.f32.mrb[0].mxu0
  %v183 = vadd.f32 0.0, %v182
  %v184 = vpop.f32.mrb[0].mxu0
  %v185 = vpop.f32.mrb[0].mxu0
  %v186 = vadd.f32 0.0, %v185
  %v187 = vpop.f32.mrb[0].mxu0
  %188 = vmatprep.mubr.bf16.mxu0 0
  %189 = vmatmul.mubr.bf16.gmra.mrb[0].mxu0 %v136
  %v190 = vpop.f32.mrb[0].mxu0
  %v191 = vadd.f32 0.0, %v190
  %v192 = vpop.f32.mrb[0].mxu0
  %v193 = vpop.f32.mrb[0].mxu0
  %v194 = vadd.f32 0.0, %v193
  %v195 = vpop.f32.mrb[0].mxu0
  %196 = vmatprep.mubr.bf16.mxu0 0
  %197 = vmatmul.mubr.bf16.gmra.mrb[0].mxu0 %v138
  %v198 = vpop.f32.mrb[0].mxu0
  %v199 = vadd.f32 0.0, %v198
  %v200 = vpop.f32.mrb[0].mxu0
  %v201 = vpop.f32.mrb[0].mxu0
  %v202 = vadd.f32 0.0, %v201
  %v203 = vpop.f32.mrb[0].mxu0
  %204 = vdwg.mxu0
  %v205 = vmax.f32 %v175, 0.0
  %v206 = vmax.f32 %v178, 0.0
  %v207 = vmax.f32 %v183, 0.0
  %v208 = vmax.f32 %v186, 0.0
  %v209 = vmax.f32 %v191, 0.0
  %v210 = vmax.f32 %v194, 0.0
  %v211 = vmax.f32 %v199, 0.0
  %v212 = vmax.f32 %v202, 0.0
  %v213 = vmin.f32 %v205, 1.0
  %v214 = vmin.f32 %v206, 1.0
  %v215 = vmin.f32 %v207, 1.0
  %v216 = vmin.f32 %v208, 1.0
  %v217 = vmin.f32 %v209, 1.0
  %v218 = vmin.f32 %v210, 1.0
  %v219 = vmin.f32 %v211, 1.0
  %v220 = vmin.f32 %v212, 1.0
  %vm221 = vcmask 64512
  %222 = vst.msk [vmem:[%s3] sm:$0xff] %vm221, %v213
  %223 = vst.msk [vmem:[%s3 + $0x8] sm:$0xff] %vm221, %v214
  %224 = vst.msk [vmem:[%s3 + $0x10] sm:$0xff] %vm221, %v215
  %225 = vst.msk [vmem:[%s3 + $0x18] sm:$0xff] %vm221, %v216
  %226 = vst.msk [vmem:[%s3 + $0x20] sm:$0xff] %vm221, %v217
  %227 = vst.msk [vmem:[%s3 + $0x28] sm:$0xff] %vm221, %v218
  %228 = vst.msk [vmem:[%s3 + $0x30] sm:$0xff] %vm221, %v219
  %229 = vst.msk [vmem:[%s3 + $0x38] sm:$0xff] %vm221, %v220
  %230 = vrot.lane.b32.xlu0 %v93, 112
  %v231 = vpop.permute.xlu0 %230
  %232 = vrot.lane.b32.xlu0 %v96, 96
  %v233 = vpop.permute.xlu0 %232
  %234 = vrot.lane.b32.xlu0 %v93, 80
  %v235 = vpop.permute.xlu0 %234
  %236 = vrot.lane.b32.xlu0 %v96, 64
  %v237 = vpop.permute.xlu0 %236
  %238 = vrot.lane.b32.xlu0 %v93, 48
  %v239 = vpop.permute.xlu0 %238
  %240 = vrot.lane.b32.xlu0 %v96, 32
  %v241 = vpop.permute.xlu0 %240
  %242 = vrot.lane.b32.xlu0 %v93, 16
  %v243 = vpop.permute.xlu0 %242
  %v246 = vsel %vm111, %v96, %v231
  %v249 = vsel %vm111, %v233, %v235
  %v252 = vsel %vm111, %v237, %v239
  %v255 = vsel %vm111, %v241, %v243
  %s256 = scalar_lea.vmem %s2, 8
  %v257 = vld [vmem:[%s256] sm:$0xf]
  %v258 = vld [vmem:[%s256 + $0x4] sm:$0xf]
  %v261 = vunpack.c.l.b16 %v257
  %v262 = vunpack.c.l.b16 %v258
  %v263 = vpack.c.b16 %v262, %v261
  %v265 = vsel %vm37, %v246, 0
  %v267 = vsel %vm37, %v249, 0
  %v269 = vsel %vm37, %v252, 0
  %v271 = vsel %vm37, %v255, 0
  %273 = vmatprep.subr.bf16.mxu0 0
  %274 = vmatpush1.bf16.msra.mxu0 %v263
  %275 = vmatprep.subr.bf16.mxu0 0
  %276 = vmatpush1.bf16.msra.mxu0 0
  %277 = vmatprep.subr.bf16.mxu0 0
  %278 = vmatpush1.bf16.msra.mxu0 0
  %279 = vmatprep.subr.bf16.mxu0 0
  %280 = vmatpush1.bf16.msra.mxu0 0
  %281 = vmatprep.subr.bf16.mxu0 0
  %282 = vmatpush1.bf16.msra.mxu0 0
  %283 = vmatprep.subr.bf16.mxu0 0
  %284 = vmatpush1.bf16.msra.mxu0 0
  %285 = vmatprep.subr.bf16.mxu0 0
  %286 = vmatpush1.bf16.msra.mxu0 0
  %287 = vmatprep.subr.bf16.mxu0 0
  %288 = vmatpush1.bf16.msra.mxu0 0
  %289 = vmatprep.subr.bf16.mxu0 0
  %290 = vmatpush1.bf16.msra.mxu0 0
  %291 = vmatprep.subr.bf16.mxu0 0
  %292 = vmatpush1.bf16.msra.mxu0 0
  %293 = vmatprep.subr.bf16.mxu0 0
  %294 = vmatpush1.bf16.msra.mxu0 0
  %295 = vmatprep.subr.bf16.mxu0 0
  %296 = vmatpush1.bf16.msra.mxu0 0
  %297 = vmatprep.subr.bf16.mxu0 0
  %298 = vmatpush1.bf16.msra.mxu0 0
  %299 = vmatprep.subr.bf16.mxu0 0
  %300 = vmatpush1.bf16.msra.mxu0 0
  %301 = vmatprep.subr.bf16.mxu0 0
  %302 = vmatpush1.bf16.msra.mxu0 0
  %303 = vmatprep.subr.bf16.mxu0 0
  %304 = vmatpush1.bf16.msra.mxu0 0
  %305 = vmatprep.mubr.bf16.mxu0 0
  %306 = vmatmul.mubr.bf16.gmra.mrb[0].mxu0 %v265
  %v307 = vpop.f32.mrb[0].mxu0
  %v308 = vadd.f32 0.0, %v307
  %v309 = vpop.f32.mrb[0].mxu0
  %v310 = vpop.f32.mrb[0].mxu0
  %v311 = vadd.f32 0.0, %v310
  %v312 = vpop.f32.mrb[0].mxu0
  %313 = vmatprep.mubr.bf16.mxu0 0
  %314 = vmatmul.mubr.bf16.gmra.mrb[0].mxu0 %v267
  %v315 = vpop.f32.mrb[0].mxu0
  %v316 = vadd.f32 0.0, %v315
  %v317 = vpop.f32.mrb[0].mxu0
  %v318 = vpop.f32.mrb[0].mxu0
  %v319 = vadd.f32 0.0, %v318
  %v320 = vpop.f32.mrb[0].mxu0
  %321 = vmatprep.mubr.bf16.mxu0 0
  %322 = vmatmul.mubr.bf16.gmra.mrb[0].mxu0 %v269
  %v323 = vpop.f32.mrb[0].mxu0
  %v324 = vadd.f32 0.0, %v323
  %v325 = vpop.f32.mrb[0].mxu0
  %v326 = vpop.f32.mrb[0].mxu0
  %v327 = vadd.f32 0.0, %v326
  %v328 = vpop.f32.mrb[0].mxu0
  %329 = vmatprep.mubr.bf16.mxu0 0
  %330 = vmatmul.mubr.bf16.gmra.mrb[0].mxu0 %v271
  %v331 = vpop.f32.mrb[0].mxu0
  %v332 = vadd.f32 0.0, %v331
  %v333 = vpop.f32.mrb[0].mxu0
  %v334 = vpop.f32.mrb[0].mxu0
  %v335 = vadd.f32 0.0, %v334
  %v336 = vpop.f32.mrb[0].mxu0
  %337 = vdwg.mxu0
  %v338 = vmax.f32 %v308, 0.0
  %v339 = vmax.f32 %v311, 0.0
  %v340 = vmax.f32 %v316, 0.0
  %v341 = vmax.f32 %v319, 0.0
  %v342 = vmax.f32 %v324, 0.0
  %v343 = vmax.f32 %v327, 0.0
  %v344 = vmax.f32 %v332, 0.0
  %v345 = vmax.f32 %v335, 0.0
  %v346 = vmin.f32 %v338, 1.0
  %v347 = vmin.f32 %v339, 1.0
  %v348 = vmin.f32 %v340, 1.0
  %v349 = vmin.f32 %v341, 1.0
  %v350 = vmin.f32 %v342, 1.0
  %v351 = vmin.f32 %v343, 1.0
  %v352 = vmin.f32 %v344, 1.0
  %v353 = vmin.f32 %v345, 1.0
  %s354 = scalar_lea.vmem %s3, 64
  %355 = vst.msk [vmem:[%s354] sm:$0xff] %vm221, %v346
  %356 = vst.msk [vmem:[%s354 + $0x8] sm:$0xff] %vm221, %v347
  %357 = vst.msk [vmem:[%s354 + $0x10] sm:$0xff] %vm221, %v348
  %358 = vst.msk [vmem:[%s354 + $0x18] sm:$0xff] %vm221, %v349
  %359 = vst.msk [vmem:[%s354 + $0x20] sm:$0xff] %vm221, %v350
  %360 = vst.msk [vmem:[%s354 + $0x28] sm:$0xff] %vm221, %v351
  %361 = vst.msk [vmem:[%s354 + $0x30] sm:$0xff] %vm221, %v352
  %362 = vst.msk [vmem:[%s354 + $0x38] sm:$0xff] %vm221, %v353
  %v364 = vrot.slane %v94, 4
  %365 = vrot.lane.b32.xlu0 %v364, 112
  %v366 = vpop.permute.xlu0 %365
  %367 = vrot.lane.b32.xlu0 %v94, 96
  %v368 = vpop.permute.xlu0 %367
  %369 = vrot.lane.b32.xlu0 %v364, 80
  %v370 = vpop.permute.xlu0 %369
  %371 = vrot.lane.b32.xlu0 %v94, 64
  %v372 = vpop.permute.xlu0 %371
  %373 = vrot.lane.b32.xlu0 %v364, 48
  %v374 = vpop.permute.xlu0 %373
  %375 = vrot.lane.b32.xlu0 %v94, 32
  %v376 = vpop.permute.xlu0 %375
  %377 = vrot.lane.b32.xlu0 %v364, 16
  %v378 = vpop.permute.xlu0 %377
  %v381 = vsel %vm111, %v94, %v366
  %v384 = vsel %vm111, %v368, %v370
  %v387 = vsel %vm111, %v372, %v374
  %v390 = vsel %vm111, %v376, %v378
  %s391 = scalar_lea.vmem %s2, 16
  %v392 = vld [vmem:[%s391] sm:$0xf]
  %v393 = vld [vmem:[%s391 + $0x4] sm:$0xf]
  %v396 = vunpack.c.l.b16 %v392
  %v397 = vunpack.c.l.b16 %v393
  %v398 = vpack.c.b16 %v397, %v396
  %v400 = vsel %vm37, %v381, 0
  %v402 = vsel %vm37, %v384, 0
  %v404 = vsel %vm37, %v387, 0
  %v406 = vsel %vm37, %v390, 0
  %408 = vmatprep.subr.bf16.mxu0 0
  %409 = vmatpush1.bf16.msra.mxu0 %v398
  %410 = vmatprep.subr.bf16.mxu0 0
  %411 = vmatpush1.bf16.msra.mxu0 0
  %412 = vmatprep.subr.bf16.mxu0 0
  %413 = vmatpush1.bf16.msra.mxu0 0
  %414 = vmatprep.subr.bf16.mxu0 0
  %415 = vmatpush1.bf16.msra.mxu0 0
  %416 = vmatprep.subr.bf16.mxu0 0
  %417 = vmatpush1.bf16.msra.mxu0 0
  %418 = vmatprep.subr.bf16.mxu0 0
  %419 = vmatpush1.bf16.msra.mxu0 0
  %420 = vmatprep.subr.bf16.mxu0 0
  %421 = vmatpush1.bf16.msra.mxu0 0
  %422 = vmatprep.subr.bf16.mxu0 0
  %423 = vmatpush1.bf16.msra.mxu0 0
  %424 = vmatprep.subr.bf16.mxu0 0
  %425 = vmatpush1.bf16.msra.mxu0 0
  %426 = vmatprep.subr.bf16.mxu0 0
  %427 = vmatpush1.bf16.msra.mxu0 0
  %428 = vmatprep.subr.bf16.mxu0 0
  %429 = vmatpush1.bf16.msra.mxu0 0
  %430 = vmatprep.subr.bf16.mxu0 0
  %431 = vmatpush1.bf16.msra.mxu0 0
  %432 = vmatprep.subr.bf16.mxu0 0
  %433 = vmatpush1.bf16.msra.mxu0 0
  %434 = vmatprep.subr.bf16.mxu0 0
  %435 = vmatpush1.bf16.msra.mxu0 0
  %436 = vmatprep.subr.bf16.mxu0 0
  %437 = vmatpush1.bf16.msra.mxu0 0
  %438 = vmatprep.subr.bf16.mxu0 0
  %439 = vmatpush1.bf16.msra.mxu0 0
  %440 = vmatprep.mubr.bf16.mxu0 0
  %441 = vmatmul.mubr.bf16.gmra.mrb[0].mxu0 %v400
  %v442 = vpop.f32.mrb[0].mxu0
  %v443 = vadd.f32 0.0, %v442
  %v444 = vpop.f32.mrb[0].mxu0
  %v445 = vpop.f32.mrb[0].mxu0
  %v446 = vadd.f32 0.0, %v445
  %v447 = vpop.f32.mrb[0].mxu0
  %448 = vmatprep.mubr.bf16.mxu0 0
  %449 = vmatmul.mubr.bf16.gmra.mrb[0].mxu0 %v402
  %v450 = vpop.f32.mrb[0].mxu0
  %v451 = vadd.f32 0.0, %v450
  %v452 = vpop.f32.mrb[0].mxu0
  %v453 = vpop.f32.mrb[0].mxu0
  %v454 = vadd.f32 0.0, %v453
  %v455 = vpop.f32.mrb[0].mxu0
  %456 = vmatprep.mubr.bf16.mxu0 0
  %457 = vmatmul.mubr.bf16.gmra.mrb[0].mxu0 %v404
  %v458 = vpop.f32.mrb[0].mxu0
  %v459 = vadd.f32 0.0, %v458
  %v460 = vpop.f32.mrb[0].mxu0
  %v461 = vpop.f32.mrb[0].mxu0
  %v462 = vadd.f32 0.0, %v461
  %v463 = vpop.f32.mrb[0].mxu0
  %464 = vmatprep.mubr.bf16.mxu0 0
  %465 = vmatmul.mubr.bf16.gmra.mrb[0].mxu0 %v406
  %v466 = vpop.f32.mrb[0].mxu0
  %v467 = vadd.f32 0.0, %v466
  %v468 = vpop.f32.mrb[0].mxu0
  %v469 = vpop.f32.mrb[0].mxu0
  %v470 = vadd.f32 0.0, %v469
  %v471 = vpop.f32.mrb[0].mxu0
  %472 = vdwg.mxu0
  %v473 = vmax.f32 %v443, 0.0
  %v474 = vmax.f32 %v446, 0.0
  %v475 = vmax.f32 %v451, 0.0
  %v476 = vmax.f32 %v454, 0.0
  %v477 = vmax.f32 %v459, 0.0
  %v478 = vmax.f32 %v462, 0.0
  %v479 = vmax.f32 %v467, 0.0
  %v480 = vmax.f32 %v470, 0.0
  %v481 = vmin.f32 %v473, 1.0
  %v482 = vmin.f32 %v474, 1.0
  %v483 = vmin.f32 %v475, 1.0
  %v484 = vmin.f32 %v476, 1.0
  %v485 = vmin.f32 %v477, 1.0
  %v486 = vmin.f32 %v478, 1.0
  %v487 = vmin.f32 %v479, 1.0
  %v488 = vmin.f32 %v480, 1.0
  %s489 = scalar_lea.vmem %s3, 128
  %490 = vst.msk [vmem:[%s489] sm:$0xff] %vm221, %v481
  %491 = vst.msk [vmem:[%s489 + $0x8] sm:$0xff] %vm221, %v482
  %492 = vst.msk [vmem:[%s489 + $0x10] sm:$0xff] %vm221, %v483
  %493 = vst.msk [vmem:[%s489 + $0x18] sm:$0xff] %vm221, %v484
  %494 = vst.msk [vmem:[%s489 + $0x20] sm:$0xff] %vm221, %v485
  %495 = vst.msk [vmem:[%s489 + $0x28] sm:$0xff] %vm221, %v486
  %496 = vst.msk [vmem:[%s489 + $0x30] sm:$0xff] %vm221, %v487
  %497 = vst.msk [vmem:[%s489 + $0x38] sm:$0xff] %vm221, %v488
  %498 = vrot.lane.b32.xlu0 %v94, 112
  %v499 = vpop.permute.xlu0 %498
  %500 = vrot.lane.b32.xlu0 %v364, 96
  %v501 = vpop.permute.xlu0 %500
  %502 = vrot.lane.b32.xlu0 %v94, 80
  %v503 = vpop.permute.xlu0 %502
  %504 = vrot.lane.b32.xlu0 %v364, 64
  %v505 = vpop.permute.xlu0 %504
  %506 = vrot.lane.b32.xlu0 %v94, 48
  %v507 = vpop.permute.xlu0 %506
  %508 = vrot.lane.b32.xlu0 %v364, 32
  %v509 = vpop.permute.xlu0 %508
  %510 = vrot.lane.b32.xlu0 %v94, 16
  %v511 = vpop.permute.xlu0 %510
  %v514 = vsel %vm111, %v364, %v499
  %v517 = vsel %vm111, %v501, %v503
  %v520 = vsel %vm111, %v505, %v507
  %v523 = vsel %vm111, %v509, %v511
  %s524 = scalar_lea.vmem %s2, 24
  %v525 = vld [vmem:[%s524] sm:$0xf]
  %v526 = vld [vmem:[%s524 + $0x4] sm:$0xf]
  %v529 = vunpack.c.l.b16 %v525
  %v530 = vunpack.c.l.b16 %v526
  %v531 = vpack.c.b16 %v530, %v529
  %v533 = vsel %vm37, %v514, 0
  %v535 = vsel %vm37, %v517, 0
  %v537 = vsel %vm37, %v520, 0
  %v539 = vsel %vm37, %v523, 0
  %541 = vmatprep.subr.bf16.mxu0 0
  %542 = vmatpush1.bf16.msra.mxu0 %v531
  %543 = vmatprep.subr.bf16.mxu0 0
  %544 = vmatpush1.bf16.msra.mxu0 0
  %545 = vmatprep.subr.bf16.mxu0 0
  %546 = vmatpush1.bf16.msra.mxu0 0
  %547 = vmatprep.subr.bf16.mxu0 0
  %548 = vmatpush1.bf16.msra.mxu0 0
  %549 = vmatprep.subr.bf16.mxu0 0
  %550 = vmatpush1.bf16.msra.mxu0 0
  %551 = vmatprep.subr.bf16.mxu0 0
  %552 = vmatpush1.bf16.msra.mxu0 0
  %553 = vmatprep.subr.bf16.mxu0 0
  %554 = vmatpush1.bf16.msra.mxu0 0
  %555 = vmatprep.subr.bf16.mxu0 0
  %556 = vmatpush1.bf16.msra.mxu0 0
  %557 = vmatprep.subr.bf16.mxu0 0
  %558 = vmatpush1.bf16.msra.mxu0 0
  %559 = vmatprep.subr.bf16.mxu0 0
  %560 = vmatpush1.bf16.msra.mxu0 0
  %561 = vmatprep.subr.bf16.mxu0 0
  %562 = vmatpush1.bf16.msra.mxu0 0
  %563 = vmatprep.subr.bf16.mxu0 0
  %564 = vmatpush1.bf16.msra.mxu0 0
  %565 = vmatprep.subr.bf16.mxu0 0
  %566 = vmatpush1.bf16.msra.mxu0 0
  %567 = vmatprep.subr.bf16.mxu0 0
  %568 = vmatpush1.bf16.msra.mxu0 0
  %569 = vmatprep.subr.bf16.mxu0 0
  %570 = vmatpush1.bf16.msra.mxu0 0
  %571 = vmatprep.subr.bf16.mxu0 0
  %572 = vmatpush1.bf16.msra.mxu0 0
  %573 = vmatprep.mubr.bf16.mxu0 0
  %574 = vmatmul.mubr.bf16.gmra.mrb[0].mxu0 %v533
  %v575 = vpop.f32.mrb[0].mxu0
  %v576 = vadd.f32 0.0, %v575
  %v577 = vpop.f32.mrb[0].mxu0
  %v578 = vpop.f32.mrb[0].mxu0
  %v579 = vadd.f32 0.0, %v578
  %v580 = vpop.f32.mrb[0].mxu0
  %581 = vmatprep.mubr.bf16.mxu0 0
  %582 = vmatmul.mubr.bf16.gmra.mrb[0].mxu0 %v535
  %v583 = vpop.f32.mrb[0].mxu0
  %v584 = vadd.f32 0.0, %v583
  %v585 = vpop.f32.mrb[0].mxu0
  %v586 = vpop.f32.mrb[0].mxu0
  %v587 = vadd.f32 0.0, %v586
  %v588 = vpop.f32.mrb[0].mxu0
  %589 = vmatprep.mubr.bf16.mxu0 0
  %590 = vmatmul.mubr.bf16.gmra.mrb[0].mxu0 %v537
  %v591 = vpop.f32.mrb[0].mxu0
  %v592 = vadd.f32 0.0, %v591
  %v593 = vpop.f32.mrb[0].mxu0
  %v594 = vpop.f32.mrb[0].mxu0
  %v595 = vadd.f32 0.0, %v594
  %v596 = vpop.f32.mrb[0].mxu0
  %597 = vmatprep.mubr.bf16.mxu0 0
  %598 = vmatmul.mubr.bf16.gmra.mrb[0].mxu0 %v539
  %v599 = vpop.f32.mrb[0].mxu0
  %v600 = vadd.f32 0.0, %v599
  %v601 = vpop.f32.mrb[0].mxu0
  %v602 = vpop.f32.mrb[0].mxu0
  %v603 = vadd.f32 0.0, %v602
  %v604 = vpop.f32.mrb[0].mxu0
  %605 = vdwg.mxu0
  %v606 = vmax.f32 %v576, 0.0
  %v607 = vmax.f32 %v579, 0.0
  %v608 = vmax.f32 %v584, 0.0
  %v609 = vmax.f32 %v587, 0.0
  %v610 = vmax.f32 %v592, 0.0
  %v611 = vmax.f32 %v595, 0.0
  %v612 = vmax.f32 %v600, 0.0
  %v613 = vmax.f32 %v603, 0.0
  %v614 = vmin.f32 %v606, 1.0
  %v615 = vmin.f32 %v607, 1.0
  %v616 = vmin.f32 %v608, 1.0
  %v617 = vmin.f32 %v609, 1.0
  %v618 = vmin.f32 %v610, 1.0
  %v619 = vmin.f32 %v611, 1.0
  %v620 = vmin.f32 %v612, 1.0
  %v621 = vmin.f32 %v613, 1.0
  %s622 = scalar_lea.vmem %s3, 192
  %623 = vst.msk [vmem:[%s622] sm:$0xff] %vm221, %v614
  %624 = vst.msk [vmem:[%s622 + $0x8] sm:$0xff] %vm221, %v615
  %625 = vst.msk [vmem:[%s622 + $0x10] sm:$0xff] %vm221, %v616
  %626 = vst.msk [vmem:[%s622 + $0x18] sm:$0xff] %vm221, %v617
  %627 = vst.msk [vmem:[%s622 + $0x20] sm:$0xff] %vm221, %v618
  %628 = vst.msk [vmem:[%s622 + $0x28] sm:$0xff] %vm221, %v619
  %629 = vst.msk [vmem:[%s622 + $0x30] sm:$0xff] %vm221, %v620
  %630 = vst.msk [vmem:[%s622 + $0x38] sm:$0xff] %vm221, %v621
  // Predicated region
  $region14: #{_forward.3} parent=0 // pred_check
    _
  $region15: #{_forward.3} parent=0 // pred_check_branch
    %632 = sbr.rel (0) target = $region17
  $region16: #{_forward.3} parent=0 // pred_region
    _
  $region17: #{_forward.3} parent=0 // pred_fallthru
    _
  // Predicated region
  $region18: #{_forward.3} parent=0 // pred_check
    _
  $region19: #{_forward.3} parent=0 // pred_check_branch
    %634 = sbr.rel (0) target = $region21
  $region20: #{_forward.3} parent=0 // pred_region
    _
  $region21: #{_forward.3} parent=0 // pred_fallthru
    _

</llo_original>
